<compile_context>
chip_gen: v5e
topology: v5e:2x2
jax: 0.10.0
libtpu: 0.0.40
codegen_flags: <defaults>
</compile_context>

<pallas_src>
import functools
import math

import jax
import jax.numpy as jnp
from jax.experimental import pallas as pl
from jax.experimental.pallas import tpu as pltpu


def _round_up(x, n):
    return ((x + n - 1) // n) * n


# ---------------------------------------------------------------------------
# Kernels
# ---------------------------------------------------------------------------
def ffn_kernel_single(x_ref, w1_ref, b1_ref, w2_ref, b2_ref, o_ref):
    # Whole hidden dim resident: fused dense1 -> bias -> ReLU -> dense2 -> bias.
    # x_ref: (tm, nh_p)  w1_ref: (nh_p, nh_p)  b1_ref: (1, nh_p) f32
    # w2_ref: (nh_p, ny_p)  b2_ref: (1, ny_p) f32  o_ref: (tm, ny_p)
    h = jnp.dot(x_ref[...], w1_ref[...], preferred_element_type=jnp.float32)
    h = jnp.maximum(h + b1_ref[...], 0.0)
    y = jnp.dot(h.astype(w2_ref.dtype), w2_ref[...],
                preferred_element_type=jnp.float32)
    o_ref[...] = (y + b2_ref[...]).astype(o_ref.dtype)


def ffn_kernel_reduce(x_ref, w1_ref, b1_ref, w2_ref, b2_ref, o_ref, acc_ref):
    # Grid: (row_tiles [parallel], hidden_tiles [arbitrary, reduction]).
    # x_ref:  (tm, nh_p)   w1_ref: (nh_p, tk)   b1_ref: (1, tk)  f32
    # w2_ref: (tk, ny_p)   b2_ref: (1, ny_p)    f32
    # o_ref:  (tm, ny_p)   acc_ref: (tm, ny_p)  f32 scratch
    k = pl.program_id(1)

    @pl.when(k == 0)
    def _init():
        acc_ref[...] = jnp.broadcast_to(b2_ref[...], acc_ref.shape)

    # dense1 slab -> bias + ReLU in f32 -> partial dense2, accumulated in f32.
    h = jnp.dot(x_ref[...], w1_ref[...], preferred_element_type=jnp.float32)
    h = jnp.maximum(h + b1_ref[...], 0.0)
    acc_ref[...] += jnp.dot(h.astype(w2_ref.dtype), w2_ref[...],
                            preferred_element_type=jnp.float32)

    @pl.when(k == pl.num_programs(1) - 1)
    def _finalize():
        o_ref[...] = acc_ref[...].astype(o_ref.dtype)


# ---------------------------------------------------------------------------
# Wrapper
# ---------------------------------------------------------------------------
def _vmem_estimate(tm, tk, nh_p, ny_p, mat_bytes, out_bytes):
    return (2 * tm * nh_p * mat_bytes        # x tile (double-buffered)
            + 2 * nh_p * tk * mat_bytes      # W1 slab
            + 2 * tk * ny_p * mat_bytes      # W2 slab
            + 2 * (tk + ny_p) * 4            # biases
            + 2 * tm * ny_p * out_bytes      # output tile
            + tm * ny_p * 4                  # f32 accumulator scratch
            + tm * tk * 4)                   # live intermediate h


@functools.partial(jax.jit, static_argnames=("tm", "tk", "use_bf16"))
def position_wise_ffn(x, w1, b1, w2, b2, *, tm=None, tk=None, use_bf16=False):
    """x: [batch, seq, nh] -> [batch, seq, ny]."""
    batch, seq, nh = x.shape
    ny = w2.shape[1]
    m = batch * seq

    out_dtype = x.dtype
    mat_dtype = jnp.bfloat16 if use_bf16 else x.dtype
    mat_bytes = jnp.dtype(mat_dtype).itemsize
    out_bytes = jnp.dtype(out_dtype).itemsize

    # ---- tile selection (shapes are static under jit) ------------------------
    align = {4: 8, 2: 16, 1: 32}[mat_bytes]  # sublane packing of the row dim
    nh_p = _round_up(nh, 128)                # lane-dense feature dims
    ny_p = _round_up(ny, 128)

    if tk is None:
        if nh_p <= 512:
            tk = nh_p
        elif nh_p % 512 == 0:
            tk = 512
        elif nh_p % 256 == 0:
            tk = 256
        else:
            tk = 128

    if tm is None:
        # Choose a row-tile count that keeps tiles big (MXU friendly) while
        # giving >= 2 tiles when the problem can use both v7x TensorCores,
        # and that minimises padded rows.
        if m <= 512:
            n_tiles = 2 if m >= 256 else 1
        else:
            n_tiles = pl.cdiv(m, 512)
        tm = _round_up(pl.cdiv(m, n_tiles), align)
        # Back off if the VMEM working set would blow past ~48 MiB (v7x safe).
        while tm > align and _vmem_estimate(tm, tk, nh_p, ny_p,
                                            mat_bytes, out_bytes) > (48 << 20):
            tm = max(align, _round_up(tm // 2, align))

    m_p = _round_up(m, tm)

    # ---- pad to lane-dense / tile-divisible shapes ----------------------------
    x2d = x.reshape(m, nh)
    x2d = jnp.pad(x2d, ((0, m_p - m), (0, nh_p - nh))).astype(mat_dtype)
    w1_p = jnp.pad(w1, ((0, nh_p - nh), (0, nh_p - nh))).astype(mat_dtype)
    w2_p = jnp.pad(w2, ((0, nh_p - nh), (0, ny_p - ny))).astype(mat_dtype)
    # Biases stay f32: bias-add + ReLU epilogue runs in f32 (also v5e-safe).
    b1_p = jnp.pad(b1.astype(jnp.float32), (0, nh_p - nh)).reshape(1, nh_p)
    b2_p = jnp.pad(b2.astype(jnp.float32), (0, ny_p - ny)).reshape(1, ny_p)

    n_row_tiles = m_p // tm
    n_k_tiles = nh_p // tk

    vmem_needed = _vmem_estimate(tm, tk, nh_p, ny_p, mat_bytes, out_bytes) + (4 << 20)
    vmem_limit = int(max(32 << 20, min(vmem_needed, 64 << 20)))

    cost = pl.CostEstimate(
        flops=2 * m_p * nh_p * (nh_p + ny_p),
        transcendentals=0,
        bytes_accessed=(m_p * nh_p + nh_p * nh_p + nh_p * ny_p) * mat_bytes
        + m_p * ny_p * out_bytes + (nh_p + ny_p) * 4,
    )

    if n_k_tiles == 1:
        # Whole hidden dim resident -> no accumulator scratch round-trip.
        grid_spec = pltpu.PrefetchScalarGridSpec(
            num_scalar_prefetch=0,
            grid=(n_row_tiles,),
            in_specs=[
                pl.BlockSpec((tm, nh_p), lambda i: (i, 0)),    # x row tile
                pl.BlockSpec((nh_p, nh_p), lambda i: (0, 0)),  # W1
                pl.BlockSpec((1, nh_p), lambda i: (0, 0)),     # b1
                pl.BlockSpec((nh_p, ny_p), lambda i: (0, 0)),  # W2
                pl.BlockSpec((1, ny_p), lambda i: (0, 0)),     # b2
            ],
            out_specs=pl.BlockSpec((tm, ny_p), lambda i: (i, 0)),
        )
        kernel = ffn_kernel_single
        dim_sem = ("parallel",)
    else:
        grid_spec = pltpu.PrefetchScalarGridSpec(
            num_scalar_prefetch=0,
            grid=(n_row_tiles, n_k_tiles),
            in_specs=[
                pl.BlockSpec((tm, nh_p), lambda i, k: (i, 0)),   # x row tile
                pl.BlockSpec((nh_p, tk), lambda i, k: (0, k)),   # W1 slab
                pl.BlockSpec((1, tk), lambda i, k: (0, k)),      # b1 slab
                pl.BlockSpec((tk, ny_p), lambda i, k: (k, 0)),   # W2 slab
                pl.BlockSpec((1, ny_p), lambda i, k: (0, 0)),    # b2
            ],
            out_specs=pl.BlockSpec((tm, ny_p), lambda i, k: (i, 0)),
            scratch_shapes=[pltpu.VMEM((tm, ny_p), jnp.float32)],
        )
        kernel = ffn_kernel_reduce
        dim_sem = ("parallel", "arbitrary")

    out2d = pl.pallas_call(
        kernel,
        out_shape=jax.ShapeDtypeStruct((m_p, ny_p), out_dtype),
        grid_spec=grid_spec,
        compiler_params=pltpu.CompilerParams(
            dimension_semantics=dim_sem,
            vmem_limit_bytes=vmem_limit,
        ),
        cost_estimate=cost,
    )(x2d, w1_p, b1_p, w2_p, b2_p)

    return out2d[:m, :ny].reshape(batch, seq, ny)


# ---------------------------------------------------------------------------
# Reference + test harness
# ---------------------------------------------------------------------------
def init_params(key, nh, ny, dtype=jnp.float32):
    """Deterministic init matching nn.Linear shapes (stored as (in, out))."""
    k1, k2, k3, k4 = jax.random.split(key, 4)
    bound = 1.0 / math.sqrt(nh)
    w1 = jax.random.uniform(k1, (nh, nh), dtype, -bound, bound)
    b1 = jax.random.uniform(k2, (nh,), dtype, -bound, bound)
    w2 = jax.random.uniform(k3, (nh, ny), dtype, -bound, bound)
    b2 = jax.random.uniform(k4, (ny,), dtype, -bound, bound)
    return w1, b1, w2, b2


def _ref_ffn(x, w1, b1, w2, b2):
    nh = x.shape[-1]
    ny = w2.shape[1]
    y = jnp.maximum(x.reshape(-1, nh) @ w1 + b1, 0.0) @ w2 + b2
    return y.reshape(*x.shape[:-1], ny)


if __name__ == "__main__":
    # Small shape consistent with the module: batch=2, seq=8, nh=32, ny=16.
    batch, seq, nh, ny = 2, 8, 32, 16
    key = jax.random.PRNGKey(0)
    kx, kp = jax.random.split(key)
    x = jax.random.normal(kx, (batch, seq, nh), jnp.float32)
    w1, b1, w2, b2 = init_params(kp, nh, ny)

    ref = _ref_ffn(x, w1, b1, w2, b2)

    # f32 path — tight tolerance (single-slab kernel).
    out = jax.block_until_ready(position_wise_ffn(x, w1, b1, w2, b2))
    assert out.shape == (batch, seq, ny)
    assert jnp.allclose(out, ref, atol=1e-5, rtol=1e-5)

    # bf16 MXU path (f32 accumulate / f32 epilogue) — looser tolerance.
    out_bf16 = jax.block_until_ready(
        position_wise_ffn(x, w1, b1, w2, b2, use_bf16=True))
    assert jnp.allclose(out_bf16, ref, atol=3e-2, rtol=3e-2)

    # Larger, non-divisible shape: exercises row padding (m=600 -> 2 tiles of
    # 304 rows, megacore-friendly) and lane padding (nh=160 -> 256, ny=48 -> 128).
    bb, ss, nh2, ny2 = 3, 200, 160, 48
    kx2, kp2 = jax.random.split(jax.random.PRNGKey(1))
    x2 = jax.random.normal(kx2, (bb, ss, nh2), jnp.float32)
    params2 = init_params(kp2, nh2, ny2)
    ref2 = _ref_ffn(x2, *params2)
    out2 = jax.block_until_ready(position_wise_ffn(x2, *params2))
    assert out2.shape == (bb, ss, ny2)
    assert jnp.allclose(out2, ref2, atol=1e-4, rtol=1e-4)

    # Wide hidden dim: exercises the hidden-dim reduction kernel
    # (nh=640 -> tk=128, 5 reduction steps, f32 VMEM accumulator).
    bb3, ss3, nh3, ny3 = 2, 64, 640, 96
    kx3, kp3 = jax.random.split(jax.random.PRNGKey(2))
    x3 = jax.random.normal(kx3, (bb3, ss3, nh3), jnp.float32)
    params3 = init_params(kp3, nh3, ny3)
    ref3 = _ref_ffn(x3, *params3)
    out3 = jax.block_until_ready(position_wise_ffn(x3, *params3))
    assert out3.shape == (bb3, ss3, ny3)
    assert jnp.allclose(out3, ref3, atol=2e-4, rtol=2e-4)

    print("KERNEL_OK")
</pallas_src>

<mosaic_0001>
module attributes {stable_mosaic.version = 11 : i64} {
  func.func @ffn_kernel_single(%arg0: i32, %arg1: memref<16x128xf32, #tpu.memory_space<vmem>>, %arg2: memref<128x128xf32, #tpu.memory_space<vmem>>, %arg3: memref<1x128xf32, #tpu.memory_space<vmem>>, %arg4: memref<128x128xf32, #tpu.memory_space<vmem>>, %arg5: memref<1x128xf32, #tpu.memory_space<vmem>>, %arg6: memref<16x128xf32, #tpu.memory_space<vmem>>) attributes {dimension_semantics = [#tpu.dimension_semantics<parallel>], iteration_bounds = array<i64: 1>, scalar_prefetch = 0 : i64, scratch_operands = 0 : i64, tpu.core_type = #tpu.core_type<tc>, window_params = [{transform_indices = @transform_0, window_bounds = array<i64: 16, 128>}, {pipeline_mode = #tpu.pipeline_mode<synchronous>, transform_indices = @transform_1, window_bounds = array<i64: 128, 128>}, {pipeline_mode = #tpu.pipeline_mode<synchronous>, transform_indices = @transform_2, window_bounds = array<i64: 1, 128>}, {pipeline_mode = #tpu.pipeline_mode<synchronous>, transform_indices = @transform_3, window_bounds = array<i64: 128, 128>}, {pipeline_mode = #tpu.pipeline_mode<synchronous>, transform_indices = @transform_4, window_bounds = array<i64: 1, 128>}, {transform_indices = @transform_5, window_bounds = array<i64: 16, 128>}]} {
    %c0 = arith.constant 0 : index
    %c0_0 = arith.constant 0 : index
    %0 = vector.load %arg1[%c0, %c0_0] : memref<16x128xf32, #tpu.memory_space<vmem>>, vector<16x128xf32>
    %c0_1 = arith.constant 0 : index
    %c0_2 = arith.constant 0 : index
    %1 = vector.load %arg2[%c0_1, %c0_2] : memref<128x128xf32, #tpu.memory_space<vmem>>, vector<128x128xf32>
    %cst = arith.constant dense<0.000000e+00> : vector<16x128xf32>
    %2 = tpu.matmul %0, %1, %cst {dimension_numbers = #tpu.dot_dimension_numbers<[1], [0], [0], [1], [0, 0, 1, 1], [], []>} : vector<16x128xf32>, vector<128x128xf32>, vector<16x128xf32> -> vector<16x128xf32>
    %c0_3 = arith.constant 0 : index
    %c0_4 = arith.constant 0 : index
    %3 = vector.load %arg3[%c0_3, %c0_4] : memref<1x128xf32, #tpu.memory_space<vmem>>, vector<1x128xf32>
    %4 = vector.broadcast %3 : vector<1x128xf32> to vector<16x128xf32>
    %5 = arith.addf %2, %4 : vector<16x128xf32>
    %cst_5 = arith.constant 0.000000e+00 : f32
    %6 = vector.broadcast %cst_5 : f32 to vector<16x128xf32>
    %7 = arith.maximumf %5, %6 : vector<16x128xf32>
    %c0_6 = arith.constant 0 : index
    %c0_7 = arith.constant 0 : index
    %8 = vector.load %arg4[%c0_6, %c0_7] : memref<128x128xf32, #tpu.memory_space<vmem>>, vector<128x128xf32>
    %cst_8 = arith.constant dense<0.000000e+00> : vector<16x128xf32>
    %9 = tpu.matmul %7, %8, %cst_8 {dimension_numbers = #tpu.dot_dimension_numbers<[1], [0], [0], [1], [0, 0, 1, 1], [], []>} : vector<16x128xf32>, vector<128x128xf32>, vector<16x128xf32> -> vector<16x128xf32>
    %c0_9 = arith.constant 0 : index
    %c0_10 = arith.constant 0 : index
    %10 = vector.load %arg5[%c0_9, %c0_10] : memref<1x128xf32, #tpu.memory_space<vmem>>, vector<1x128xf32>
    %11 = vector.broadcast %10 : vector<1x128xf32> to vector<16x128xf32>
    %12 = arith.addf %9, %11 : vector<16x128xf32>
    %c0_11 = arith.constant 0 : index
    %c0_12 = arith.constant 0 : index
    %13 = vector.load %arg6[%c0_11, %c0_12] : memref<16x128xf32, #tpu.memory_space<vmem>>, vector<16x128xf32>
    tpu.vector_store %arg6[%c0_11, %c0_12], %12 {strides = array<i32>} : memref<16x128xf32, #tpu.memory_space<vmem>>, vector<16x128xf32>,
    return
  }
  func.func @transform_0(%arg0: i32) -> (i32, i32) {
    %c0_i32 = arith.constant 0 : i32
    %c0_i32_0 = arith.constant 0 : i32
    return %arg0, %c0_i32 : i32, i32
  }
  func.func @transform_1(%arg0: i32) -> (i32, i32) {
    %c0_i32 = arith.constant 0 : i32
    %c0_i32_0 = arith.constant 0 : i32
    %c0_i32_1 = arith.constant 0 : i32
    return %c0_i32, %c0_i32_0 : i32, i32
  }
  func.func @transform_2(%arg0: i32) -> (i32, i32) {
    %c0_i32 = arith.constant 0 : i32
    %c0_i32_0 = arith.constant 0 : i32
    %c0_i32_1 = arith.constant 0 : i32
    return %c0_i32, %c0_i32_0 : i32, i32
  }
  func.func @transform_3(%arg0: i32) -> (i32, i32) {
    %c0_i32 = arith.constant 0 : i32
    %c0_i32_0 = arith.constant 0 : i32
    %c0_i32_1 = arith.constant 0 : i32
    return %c0_i32, %c0_i32_0 : i32, i32
  }
  func.func @transform_4(%arg0: i32) -> (i32, i32) {
    %c0_i32 = arith.constant 0 : i32
    %c0_i32_0 = arith.constant 0 : i32
    %c0_i32_1 = arith.constant 0 : i32
    return %c0_i32, %c0_i32_0 : i32, i32
  }
  func.func @transform_5(%arg0: i32) -> (i32, i32) {
    %c0_i32 = arith.constant 0 : i32
    %c0_i32_0 = arith.constant 0 : i32
    return %arg0, %c0_i32 : i32, i32
  }
}

</mosaic_0001>

<llo_original>
// kernel: position_wise_ffn.1
$region0: #{position_wise_ffn.1}
  #allocation0 [shape = 'u32[]', space=smem, size = 0x4, offset = 0x4, fixed_abs, tag = 'smem constant byte address 0x4 - core index']
  #allocation1 [shape = 'u32[72,128]{1,0:T(1,128)}', space=vmem, size = 0x9000, scoped, tag = 'internal scratch']
  %s0 = inlined_call_operand.vmem [shape: f32[16,128], index: 0, kind: input, shape index: {}]
  %s1 = inlined_call_operand.vmem [shape: f32[128,128], index: 1, kind: input, shape index: {}]
  %s2 = inlined_call_operand.vmem [shape: f32[1,128], index: 2, kind: input, shape index: {}]
  %s3 = inlined_call_operand.vmem [shape: f32[128,128], index: 3, kind: input, shape index: {}]
  %s4 = inlined_call_operand.vmem [shape: f32[1,128], index: 4, kind: input, shape index: {}]
  %s5 = inlined_call_operand.vmem [shape: f32[16,128], index: 5, kind: output, shape index: {}]
  %s6 = sld [smem:[#allocation0]]
  $region30: #{position_wise_ffn.1} parent=0
    _
  %s8 = ssub.s32 1, %s6
  %s9 = scalar_select 0, %s8, %s6
  // Predicated region
  $region2: #{position_wise_ffn.1} parent=0 // pred_check
    _
  $region3: #{position_wise_ffn.1} parent=0 // pred_check_branch
    %11 = sbr.rel (0) target = $region5
  $region4: #{position_wise_ffn.1} parent=0 // pred_region
    _
  $region5: #{position_wise_ffn.1} parent=0 // pred_fallthru
    _
  // Predicated region
  $region6: #{position_wise_ffn.1} parent=0 // pred_check
    _
  $region7: #{position_wise_ffn.1} parent=0 // pred_check_branch
    %13 = sbr.rel (0) target = $region9
  $region8: #{position_wise_ffn.1} parent=0 // pred_region
    _
  $region9: #{position_wise_ffn.1} parent=0 // pred_fallthru
    _
  // Predicated region
  $region10: #{position_wise_ffn.1} parent=0 // pred_check
    _
  $region11: #{position_wise_ffn.1} parent=0 // pred_check_branch
    %15 = sbr.rel (0) target = $region13
  $region12: #{position_wise_ffn.1} parent=0 // pred_region
    _
  $region13: #{position_wise_ffn.1} parent=0 // pred_fallthru
    _
  // Predicated region
  $region14: #{position_wise_ffn.1} parent=0 // pred_check
    _
  $region15: #{position_wise_ffn.1} parent=0 // pred_check_branch
    %17 = sbr.rel (0) target = $region17
  $region16: #{position_wise_ffn.1} parent=0 // pred_region
    _
  $region17: #{position_wise_ffn.1} parent=0 // pred_fallthru
    _
  // Predicated region
  $region18: #{position_wise_ffn.1} parent=0 // pred_check
    _
  $region19: #{position_wise_ffn.1} parent=0 // pred_check_branch
    %19 = sbr.rel (0) target = $region21
  $region20: #{position_wise_ffn.1} parent=0 // pred_region
    _
  $region21: #{position_wise_ffn.1} parent=0 // pred_fallthru
    _
  %v20 = vld [vmem:[%s0] sm:$0xff]
  %v21 = vld [vmem:[%s0 + $0x8] sm:$0xff]
  %v22 = vld [vmem:[%s1] sm:$0xff]
  %v23 = vld [vmem:[%s1 + $0x8] sm:$0xff]
  %v24 = vld [vmem:[%s1 + $0x10] sm:$0xff]
  %v25 = vld [vmem:[%s1 + $0x18] sm:$0xff]
  %v26 = vld [vmem:[%s1 + $0x20] sm:$0xff]
  %v27 = vld [vmem:[%s1 + $0x28] sm:$0xff]
  %v28 = vld [vmem:[%s1 + $0x30] sm:$0xff]
  %v29 = vld [vmem:[%s1 + $0x38] sm:$0xff]
  %v30 = vld [vmem:[%s1 + $0x40] sm:$0xff]
  %v31 = vld [vmem:[%s1 + $0x48] sm:$0xff]
  %v32 = vld [vmem:[%s1 + $0x50] sm:$0xff]
  %v33 = vld [vmem:[%s1 + $0x58] sm:$0xff]
  %v34 = vld [vmem:[%s1 + $0x60] sm:$0xff]
  %v35 = vld [vmem:[%s1 + $0x68] sm:$0xff]
  %v36 = vld [vmem:[%s1 + $0x70] sm:$0xff]
  %v37 = vld [vmem:[%s1 + $0x78] sm:$0xff]
  %v38 = vld [vmem:[%s2] sm:$0x1]
  %v40 = vperm.slane %v38, 0
  %42 = vmatpush.msra.mxu0 %v37
  %43 = vmatpush.msra.mxu0 %v36
  %44 = vmatpush.msra.mxu0 %v35
  %45 = vmatpush.msra.mxu0 %v34
  %46 = vmatpush.msra.mxu0 %v33
  %47 = vmatpush.msra.mxu0 %v32
  %48 = vmatpush.msra.mxu0 %v31
  %49 = vmatpush.msra.mxu0 %v30
  %50 = vmatpush.msra.mxu0 %v29
  %51 = vmatpush.msra.mxu0 %v28
  %52 = vmatpush.msra.mxu0 %v27
  %53 = vmatpush.msra.mxu0 %v26
  %54 = vmatpush.msra.mxu0 %v25
  %55 = vmatpush.msra.mxu0 %v24
  %56 = vmatpush.msra.mxu0 %v23
  %57 = vmatpush.msra.mxu0 %v22
  %58 = vmatmul.f32.gmra.mxu0 %v20
  %v59 = vpop.f32.mrf.mxu0
  %v60 = vadd.f32 %v40, %v59
  %61 = vmatmul.f32.gmra.mxu0 %v21
  %v62 = vpop.f32.mrf.mxu0
  %v63 = vadd.f32 %v40, %v62
  %64 = vdwg.mxu0
  %v65 = vmax.f32 %v60, 0.0
  %v66 = vmax.f32 %v63, 0.0
  %v67 = vld [vmem:[%s3] sm:$0xff]
  %v68 = vld [vmem:[%s3 + $0x8] sm:$0xff]
  %v69 = vld [vmem:[%s3 + $0x10] sm:$0xff]
  %v70 = vld [vmem:[%s3 + $0x18] sm:$0xff]
  %v71 = vld [vmem:[%s3 + $0x20] sm:$0xff]
  %v72 = vld [vmem:[%s3 + $0x28] sm:$0xff]
  %v73 = vld [vmem:[%s3 + $0x30] sm:$0xff]
  %v74 = vld [vmem:[%s3 + $0x38] sm:$0xff]
  %v75 = vld [vmem:[%s3 + $0x40] sm:$0xff]
  %v76 = vld [vmem:[%s3 + $0x48] sm:$0xff]
  %v77 = vld [vmem:[%s3 + $0x50] sm:$0xff]
  %v78 = vld [vmem:[%s3 + $0x58] sm:$0xff]
  %v79 = vld [vmem:[%s3 + $0x60] sm:$0xff]
  %v80 = vld [vmem:[%s3 + $0x68] sm:$0xff]
  %v81 = vld [vmem:[%s3 + $0x70] sm:$0xff]
  %v82 = vld [vmem:[%s3 + $0x78] sm:$0xff]
  %v83 = vld [vmem:[%s4] sm:$0x1]
  %v85 = vperm.slane %v83, 0
  %87 = vmatpush.msra.mxu0 %v82
  %88 = vmatpush.msra.mxu0 %v81
  %89 = vmatpush.msra.mxu0 %v80
  %90 = vmatpush.msra.mxu0 %v79
  %91 = vmatpush.msra.mxu0 %v78
  %92 = vmatpush.msra.mxu0 %v77
  %93 = vmatpush.msra.mxu0 %v76
  %94 = vmatpush.msra.mxu0 %v75
  %95 = vmatpush.msra.mxu0 %v74
  %96 = vmatpush.msra.mxu0 %v73
  %97 = vmatpush.msra.mxu0 %v72
  %98 = vmatpush.msra.mxu0 %v71
  %99 = vmatpush.msra.mxu0 %v70
  %100 = vmatpush.msra.mxu0 %v69
  %101 = vmatpush.msra.mxu0 %v68
  %102 = vmatpush.msra.mxu0 %v67
  %103 = vmatmul.f32.gmra.mxu0 %v65
  %v104 = vpop.f32.mrf.mxu0
  %v105 = vadd.f32 %v85, %v104
  %106 = vmatmul.f32.gmra.mxu0 %v66
  %v107 = vpop.f32.mrf.mxu0
  %v108 = vadd.f32 %v85, %v107
  %109 = vdwg.mxu0
  %110 = vst [vmem:[%s5] sm:$0xff] %v105
  %111 = vst [vmem:[%s5 + $0x8] sm:$0xff] %v108
  // Predicated region
  $region22: #{position_wise_ffn.1} parent=0 // pred_check
    _
  $region23: #{position_wise_ffn.1} parent=0 // pred_check_branch
    %113 = sbr.rel (0) target = $region25
  $region24: #{position_wise_ffn.1} parent=0 // pred_region
    _
  $region25: #{position_wise_ffn.1} parent=0 // pred_fallthru
    _
  // Predicated region
  $region26: #{position_wise_ffn.1} parent=0 // pred_check
    _
  $region27: #{position_wise_ffn.1} parent=0 // pred_check_branch
    %115 = sbr.rel (0) target = $region29
  $region28: #{position_wise_ffn.1} parent=0 // pred_region
    _
  $region29: #{position_wise_ffn.1} parent=0 // pred_fallthru
    _

</llo_original>
